<compile_context>
chip_gen: v7x
topology: tpu7x:2x2x1
jax: 0.10.0
libtpu: 0.0.40
codegen_flags: <defaults>
</compile_context>

<pallas_src>
import functools

import jax
import jax.numpy as jnp
from jax import lax
from jax.experimental import pallas as pl
from jax.experimental.pallas import tpu as pltpu


_MAX_CHUNK = 512                   # columns per inner matmul (bounds vreg use)
_VMEM_BUDGET = 8 * 1024 * 1024     # conservative across v5e/v6e/v7x defaults


def _grid_sample_line_kernel(gy_ref, line_ref, out_ref, *, n_total, chunk,
                             num_chunks):
    """1-D grid_sample (align_corners=True, zeros padding) via hat-weight matmul.

    gy_ref:   (1, TN)  f32 -- normalized sample coords, lane-major
    line_ref: (C, H)   f32 -- line coefficients, VMEM-resident across tiles
    out_ref:  (C, TN)      -- sampled features, lane-dense
    """
    line = line_ref[...]                                   # (C, H)
    h = line.shape[1]
    tn = out_ref.shape[1]
    tile_base = pl.program_id(0) * tn                      # global column offset

    scale = jnp.float32(0.5 * (h - 1))
    # Hoisted loop invariants (JAX does not CSE broadcast_in_dim in loops).
    h_idx = lax.broadcasted_iota(jnp.int32, (h, chunk), 0).astype(jnp.float32)
    col_idx = lax.broadcasted_iota(jnp.int32, (1, chunk), 1)

    def body(j, carry):
        off = pl.multiple_of(j * chunk, 128)
        gy = gy_ref[:, pl.ds(off, chunk)]                  # (1, chunk)
        # Columns past the true N (ragged last tile) read unspecified HBM;
        # push them far outside [-1, 1] so their hat weights are exactly zero.
        col = tile_base + off + col_idx
        gy = jnp.where(col < n_total, gy, jnp.float32(-10.0))
        # align_corners=True source index: iy = (gy + 1)/2 * (H - 1)
        iy = (gy + 1.0) * scale                            # (1, chunk)
        # Hat (triangle) kernel == bilinear weights with zeros padding.
        wmat = jnp.maximum(0.0, 1.0 - jnp.abs(h_idx - iy))  # (H, chunk)
        # (C, H) @ (H, chunk) -> (C, chunk) on the MXU.
        out_ref[:, pl.ds(off, chunk)] = jnp.dot(
            line, wmat, preferred_element_type=jnp.float32).astype(out_ref.dtype)
        return carry

    lax.fori_loop(0, num_chunks, body, None, unroll=(num_chunks <= 8))


def _round_up(x, m):
    return ((x + m - 1) // m) * m


@functools.partial(jax.jit, static_argnames=("tile_n", "out_dtype"))
def _grid_sample_line(line_2d, gy, *, tile_n=32768, out_dtype=jnp.float32):
    """line_2d: (C, H) f32, gy: (N,) f32  ->  (C, N) out_dtype."""
    c, h = line_2d.shape
    n = int(gy.shape[0])

    n128 = _round_up(max(n, 1), 128)

    # Tile size: as big as possible to amortize per-grid-step overhead,
    # subject to (a) double-buffered VMEM budget ((C+1)*TN*4 bytes x2 + line)
    # that holds on every generation, and (b) >= ~4 tiles when N allows it so
    # the parallel grid axis can feed both v7x TensorCores.
    bytes_per_col = 2 * (c + 1) * 4
    vmem_cap = max(128, (_VMEM_BUDGET - 2 * c * h * 4) // bytes_per_col)
    megacore_cap = max(128, _round_up(-(-n128 // 4), 128))
    tn = min(int(tile_n), int(vmem_cap), megacore_cap, n128)
    tn = max(128, (tn // 128) * 128)
    if tn >= _MAX_CHUNK:
        tn = (tn // _MAX_CHUNK) * _MAX_CHUNK
        chunk = _MAX_CHUNK
    else:
        chunk = tn
    num_chunks = tn // chunk
    num_tiles = pl.cdiv(n, tn)

    kernel = functools.partial(
        _grid_sample_line_kernel, n_total=n, chunk=chunk, num_chunks=num_chunks)

    return pl.pallas_call(
        kernel,
        out_shape=jax.ShapeDtypeStruct((c, n), out_dtype),
        grid=(num_tiles,),
        in_specs=[
            pl.BlockSpec((1, tn), lambda i: (0, i)),    # gy tile (lane-dense)
            pl.BlockSpec((c, h), lambda i: (0, 0)),     # line stays resident
        ],
        out_specs=pl.BlockSpec((c, tn), lambda i: (0, i)),
        compiler_params=pltpu.CompilerParams(
            dimension_semantics=("parallel",)),
        cost_estimate=pl.CostEstimate(
            flops=2 * c * h * n,
            transcendentals=0,
            bytes_accessed=(c + 1) * n * 4 + c * h * 4),
    )(gy.reshape(1, n).astype(jnp.float32), line_2d.astype(jnp.float32))


class WrapLine:
    """JAX/Pallas port of the PyTorch WrapLine module (DDP wrap is a no-op here)."""

    def __init__(self, line_coef):
        # line_coef: list of arrays with NCHW shape (1, C, H_i, 1)
        self.line = [jnp.asarray(l, jnp.float32) for l in line_coef]

    def forward(self, coordinate_line, idx_plane, idx_dim, align_corners=True):
        # coordinate_line: (D, N, 1, 2); coordinate_line[[idx_dim]] -> (1, N, 1, 2)
        assert align_corners, "only align_corners=True is supported"
        line = self.line[idx_plane]                 # (1, C, H, 1)
        _, c, h, w = line.shape
        assert w == 1, "WrapLine parameters are line factors with W == 1"
        grid = coordinate_line[idx_dim]             # (N, 1, 2)
        gy = grid[:, 0, 1]                          # y coord drives sampling (W==1)
        out_cn = _grid_sample_line(line.reshape(c, h), gy)   # (C, N)
        # Match F.grid_sample output layout: (1, C, N_out=N, W_out=1)
        return out_cn.reshape(1, c, gy.shape[0], 1)

    __call__ = forward


def _reference_grid_sample_line(line_2d, gy):
    """Pure-jnp reference of 1-D grid_sample (align_corners=True, zeros pad)."""
    c, h = line_2d.shape
    iy = (gy + 1.0) * 0.5 * (h - 1)
    y0 = jnp.floor(iy)
    w1 = iy - y0
    w0 = 1.0 - w1

    def gather_valid(idx):
        valid = (idx >= 0) & (idx <= h - 1)
        idx_c = jnp.clip(idx, 0, h - 1).astype(jnp.int32)
        return jnp.where(valid[None, :], line_2d[:, idx_c], 0.0)

    return w0[None, :] * gather_valid(y0) + w1[None, :] * gather_valid(y0 + 1.0)


if __name__ == "__main__":
    key = jax.random.PRNGKey(0)
    k_lines, k_coords, k_big, k_chunk = jax.random.split(key, 4)

    # Deterministic synthetic parameters: 3 line factors (like density_line),
    # NCHW shapes (1, n_comp, grid_size_i, 1).
    n_comp = 4
    grid_sizes = (16, 20, 24)
    line_keys = jax.random.split(k_lines, len(grid_sizes))
    line_coef = [
        0.1 * jax.random.normal(lk, (1, n_comp, gs, 1), dtype=jnp.float32)
        for lk, gs in zip(line_keys, grid_sizes)
    ]

    # coordinate_line: (3, N, 1, 2) with grid[..., 0] = 0 (x, unused, W==1)
    # and grid[..., 1] = normalized sample coordinate in [-1, 1].
    n_samples = 8
    coords = jax.random.uniform(
        k_coords, (3, n_samples), dtype=jnp.float32, minval=-1.0, maxval=1.0)
    coordinate_line = jnp.stack(
        [jnp.zeros_like(coords), coords], axis=-1).reshape(3, n_samples, 1, 2)

    model = WrapLine(line_coef)
    idx_plane, idx_dim = 1, 1
    out = model(coordinate_line, idx_plane, idx_dim, align_corners=True)
    out = jax.block_until_ready(out)

    # Check 1: small N through the module wrapper (single ragged tile).
    line = line_coef[idx_plane]
    ref = _reference_grid_sample_line(
        line.reshape(n_comp, grid_sizes[idx_plane]),
        coordinate_line[idx_dim, :, 0, 1],
    ).reshape(1, n_comp, n_samples, 1)
    assert out.shape == (1, n_comp, n_samples, 1), out.shape
    assert jnp.allclose(out, ref, atol=1e-5, rtol=1e-5), (
        f"max err {jnp.max(jnp.abs(out - ref))}")

    # Check 2: ragged N with a small tile to exercise multiple grid steps,
    # the resident line block, and the masked (out-of-range) last tile.
    n_big = 300
    gy_big = jax.random.uniform(
        k_big, (n_big,), dtype=jnp.float32, minval=-1.1, maxval=1.1)
    line2d = line_coef[2].reshape(n_comp, grid_sizes[2])
    out_big = jax.block_until_ready(
        _grid_sample_line(line2d, gy_big, tile_n=128))
    ref_big = _reference_grid_sample_line(line2d, gy_big)
    assert out_big.shape == (n_comp, n_big), out_big.shape
    assert jnp.allclose(out_big, ref_big, atol=1e-5, rtol=1e-5), (
        f"max err {jnp.max(jnp.abs(out_big - ref_big))}")

    # Check 3: moderate N with the default tile size to exercise the inner
    # multi-chunk fori_loop (tn >= 1024, chunk = 512) plus a ragged last tile.
    n_chunked = 4608
    gy_chunked = jax.random.uniform(
        k_chunk, (n_chunked,), dtype=jnp.float32, minval=-1.05, maxval=1.05)
    out_chunked = jax.block_until_ready(_grid_sample_line(line2d, gy_chunked))
    ref_chunked = _reference_grid_sample_line(line2d, gy_chunked)
    assert out_chunked.shape == (n_comp, n_chunked), out_chunked.shape
    assert jnp.allclose(out_chunked, ref_chunked, atol=1e-5, rtol=1e-5), (
        f"max err {jnp.max(jnp.abs(out_chunked - ref_chunked))}")

    print("KERNEL_OK")
</pallas_src>

<mosaic_0001>
module attributes {stable_mosaic.version = 11 : i64} {
  func.func @_grid_sample_line_kernel(%arg0: i32, %arg1: memref<1x128xf32, #tpu.memory_space<vmem>>, %arg2: memref<4x20xf32, #tpu.memory_space<vmem>>, %arg3: memref<4x128xf32, #tpu.memory_space<vmem>>) attributes {dimension_semantics = [#tpu.dimension_semantics<parallel>], iteration_bounds = array<i64: 1>, scalar_prefetch = 0 : i64, scratch_operands = 0 : i64, tpu.core_type = #tpu.core_type<tc>, window_params = [{transform_indices = @transform_0, window_bounds = array<i64: 1, 128>}, {pipeline_mode = #tpu.pipeline_mode<synchronous>, transform_indices = @transform_1, window_bounds = array<i64: 4, 20>}, {transform_indices = @transform_2, window_bounds = array<i64: 4, 128>}]} {
    %c0 = arith.constant 0 : index
    %c0_0 = arith.constant 0 : index
    %0 = vector.load %arg2[%c0, %c0_0] : memref<4x20xf32, #tpu.memory_space<vmem>>, vector<4x20xf32>
    %c128_i32 = arith.constant 128 : i32
    %1 = arith.muli %arg0, %c128_i32 : i32
    %2 = tpu.iota {dimensions = array<i32: 0>} : vector<20x128xi32>
    %3 = arith.sitofp %2 : vector<20x128xi32> to vector<20x128xf32>
    %4 = tpu.iota {dimensions = array<i32: 1>} : vector<1x128xi32>
    %cst = arith.constant 9.500000e+00 : f32
    %c0_i32 = arith.constant 0 : i32
    %c128_i32_1 = arith.constant 128 : i32
    %5 = arith.muli %c0_i32, %c128_i32_1 : i32
    %6 = tpu.assume_multiple %5, 128 : i32
    %c0_2 = arith.constant 0 : index
    %7 = arith.index_cast %6 : i32 to index
    %8 = vector.load %arg1[%c0_2, %7] : memref<1x128xf32, #tpu.memory_space<vmem>>, vector<1x128xf32>
    %9 = arith.addi %1, %6 : i32
    %10 = vector.broadcast %9 : i32 to vector<1x128xi32>
    %11 = arith.addi %10, %4 : vector<1x128xi32>
    %c8_i32 = arith.constant 8 : i32
    %12 = vector.broadcast %c8_i32 : i32 to vector<1x128xi32>
    %13 = arith.cmpi slt, %11, %12 : vector<1x128xi32>
    %cst_3 = arith.constant -1.000000e+01 : f32
    %14 = vector.broadcast %cst_3 : f32 to vector<1x128xf32>
    %15 = arith.select %13, %8, %14 : vector<1x128xi1>, vector<1x128xf32>
    %cst_4 = arith.constant 1.000000e+00 : f32
    %16 = vector.broadcast %cst_4 : f32 to vector<1x128xf32>
    %17 = arith.addf %15, %16 : vector<1x128xf32>
    %18 = vector.broadcast %cst : f32 to vector<1x128xf32>
    %19 = arith.mulf %17, %18 : vector<1x128xf32>
    %20 = vector.broadcast %19 : vector<1x128xf32> to vector<20x128xf32>
    %21 = arith.subf %3, %20 : vector<20x128xf32>
    %22 = math.absf %21 : vector<20x128xf32>
    %cst_5 = arith.constant 1.000000e+00 : f32
    %23 = vector.broadcast %cst_5 : f32 to vector<20x128xf32>
    %24 = arith.subf %23, %22 : vector<20x128xf32>
    %cst_6 = arith.constant 0.000000e+00 : f32
    %25 = vector.broadcast %cst_6 : f32 to vector<20x128xf32>
    %26 = arith.maximumf %25, %24 : vector<20x128xf32>
    %cst_7 = arith.constant dense<0.000000e+00> : vector<4x128xf32>
    %27 = tpu.matmul %0, %26, %cst_7 {dimension_numbers = #tpu.dot_dimension_numbers<[1], [0], [0], [1], [0, 0, 1, 1], [], []>} : vector<4x20xf32>, vector<20x128xf32>, vector<4x128xf32> -> vector<4x128xf32>
    %c0_8 = arith.constant 0 : index
    %28 = arith.index_cast %6 : i32 to index
    %29 = vector.load %arg3[%c0_8, %28] : memref<4x128xf32, #tpu.memory_space<vmem>>, vector<4x128xf32>
    tpu.vector_store %arg3[%c0_8, %28], %27 {strides = array<i32>} : memref<4x128xf32, #tpu.memory_space<vmem>>, vector<4x128xf32>,
    %c1_i32 = arith.constant 1 : i32
    return
  }
  func.func @transform_0(%arg0: i32) -> (i32, i32) {
    %c0_i32 = arith.constant 0 : i32
    %c0_i32_0 = arith.constant 0 : i32
    return %c0_i32, %arg0 : i32, i32
  }
  func.func @transform_1(%arg0: i32) -> (i32, i32) {
    %c0_i32 = arith.constant 0 : i32
    %c0_i32_0 = arith.constant 0 : i32
    %c0_i32_1 = arith.constant 0 : i32
    return %c0_i32, %c0_i32_0 : i32, i32
  }
  func.func @transform_2(%arg0: i32) -> (i32, i32) {
    %c0_i32 = arith.constant 0 : i32
    %c0_i32_0 = arith.constant 0 : i32
    return %c0_i32, %arg0 : i32, i32
  }
}

</mosaic_0001>

<llo_original>
// kernel: _grid_sample_line.1
$region0: #{_grid_sample_line.1}
  #allocation0 [shape = 'u32[]', space=smem, size = 0x4, offset = 0x4, fixed_abs, tag = 'smem constant byte address 0x4 - core index']
  #allocation1 [shape = 'u32[144,128]{1,0:T(1,128)}', space=vmem, size = 0x12000, scoped, tag = 'internal scratch']
  %s0 = inlined_call_operand.vmem [shape: f32[1,8], index: 0, kind: input, shape index: {}]
  %s1 = inlined_call_operand.hbm [shape: f32[4,20], index: 1, kind: input, shape index: {}]
  %s2 = inlined_call_operand.hbm [shape: f32[4,8], index: 2, kind: output, shape index: {}]
  %s3 = sld [smem:[#allocation0]]
  $region22: #{_grid_sample_line.1} parent=0
    _
  %s5 = ssub.s32 1, %s3
  %s6 = scalar_select 0, %s5, %s3
  $region1: #{_grid_sample_line.1} parent=0
    #allocation2 [shape = 'u8[2048]{0}', space=vmem, size = 0x800, scoped, tag = 'input window, operand 1, single buffered']
    #allocation3 [shape = 's32[1]{0}', space=sflag, size = 0x4, scoped, tag = 'scoped memory for _grid_sample_line.1']
    #allocation4 [shape = 's32[1]{0}', space=sflag, size = 0x4, scoped, tag = 'scoped memory for _grid_sample_line.1']
    #allocation5 [shape = 'u8[2048]{0}', space=vmem, size = 0x800, scoped, tag = 'output window, operand 0, single buffered']
    %7 = vsyncpa [#allocation3], 0
    %8 = vsyncpa [#allocation4], 0
    // Predicated region
    $region2: #{_grid_sample_line.1} parent=1 // pred_check
      _
    $region3: #{_grid_sample_line.1} parent=1 // pred_check_branch
      %10 = sbr.rel (0) target = $region5
    $region4: #{_grid_sample_line.1} parent=1 // pred_region
      _
    $region5: #{_grid_sample_line.1} parent=1 // pred_fallthru
      _
    // Predicated region
    $region6: #{_grid_sample_line.1} parent=1 // pred_check
      _
    $region7: #{_grid_sample_line.1} parent=1 // pred_check_branch
      %12 = sbr.rel (0) target = $region9
    $region8: #{_grid_sample_line.1} parent=1 // pred_region
      %s14 = ssub.s32 64, 64
      %15 = vsyncadd [#allocation3], %s14
      %s17 = sshll.u32 [#allocation2], 4
      %s18 = int_to_ptr.vmem [resolvable:$true] %s17
      %20 = dma.hbm_to_vmem [thread:$0]  %s1, 64, %s18, [#allocation3]
    $region9: #{_grid_sample_line.1} parent=1 // pred_fallthru
      _
    // Predicated region
    $region10: #{_grid_sample_line.1} parent=1 // pred_check
      _
    $region11: #{_grid_sample_line.1} parent=1 // pred_check_branch
      %22 = sbr.rel (0) target = $region13
    $region12: #{_grid_sample_line.1} parent=1 // pred_region
      %23 = dma.done [#allocation3], 64
    $region13: #{_grid_sample_line.1} parent=1 // pred_fallthru
      _
    %v24 = vld [vmem:[#allocation2] sm:$0xf]
    %s25 = smul.u32 0, 128
    %v26 = vlaneseq
    %v27 = vshrl.u32 %v26, 7
    %v28 = vadd.s32 %v27, 8
    %v29 = vadd.s32 %v27, 16
    %v30 = vcvt.s32.f32 %v27
    %v31 = vcvt.s32.f32 %v28
    %v32 = vcvt.s32.f32 %v29
    %v33 = vlaneseq
    %v34 = vand.u32 %v33, 127
    %v35 = vld [vmem:[%s0] sm:$0x1]
    %s36 = sadd.s32 %s25, 0
    %v37 = vstv %s36
    %v38 = vadd.s32 %v37, %v34
    %vm39 = vcmp.lt.s32.totalorder %v38, 8
    %v40 = vsel %vm39, %v35, -10.0
    %v41 = vadd.f32 %v40, 1.0
    %v42 = vmul.f32 %v41, 9.5
    %v43 = vlaneseq
    %v44 = vshrl.u32 %v43, 7
    %v45 = vsub.s32 0, %v44
    %v46 = vrot.slane %v42, %v45
    %v47 = vsub.f32 %v30, %v46
    %v48 = vsub.f32 %v31, %v46
    %v49 = vsub.f32 %v32, %v46
    %v50 = vand.u32 2147483647, %v47
    %v51 = vand.u32 2147483647, %v48
    %v52 = vand.u32 2147483647, %v49
    %v53 = vsub.f32 1.0, %v50
    %v54 = vsub.f32 1.0, %v51
    %v55 = vsub.f32 1.0, %v52
    %v56 = vmax.f32 %v53, 0.0
    %v57 = vmax.f32 %v54, 0.0
    %v58 = vmax.f32 %v55, 0.0
    %vm59 = vcmask 162816
    %v61 = vsel %vm59, %v24, 0
    %vm63 = vcmask 1043456
    %v65 = vsel %vm63, %v58, 0
    %67 = vmatprep.subr.mxu0 0.0
    %68 = vmatpush1.msra.mxu0 %v56
    %69 = vmatprep.subr.mxu0 0.0
    %70 = vmatpush1.msra.mxu0 %v57
    %71 = vmatprep.subr.mxu0 0.0
    %72 = vmatpush1.msra.mxu0 %v65
    %73 = vmatprep.subr.mxu0 0.0
    %74 = vmatpush1.msra.mxu0 0.0
    %75 = vmatprep.subr.mxu0 0.0
    %76 = vmatpush1.msra.mxu0 0.0
    %77 = vmatprep.subr.mxu0 0.0
    %78 = vmatpush1.msra.mxu0 0.0
    %79 = vmatprep.subr.mxu0 0.0
    %80 = vmatpush1.msra.mxu0 0.0
    %81 = vmatprep.subr.mxu0 0.0
    %82 = vmatpush1.msra.mxu0 0.0
    %83 = vmatprep.subr.mxu0 0.0
    %84 = vmatpush1.msra.mxu0 0.0
    %85 = vmatprep.subr.mxu0 0.0
    %86 = vmatpush1.msra.mxu0 0.0
    %87 = vmatprep.subr.mxu0 0.0
    %88 = vmatpush1.msra.mxu0 0.0
    %89 = vmatprep.subr.mxu0 0.0
    %90 = vmatpush1.msra.mxu0 0.0
    %91 = vmatprep.subr.mxu0 0.0
    %92 = vmatpush1.msra.mxu0 0.0
    %93 = vmatprep.subr.mxu0 0.0
    %94 = vmatpush1.msra.mxu0 0.0
    %95 = vmatprep.subr.mxu0 0.0
    %96 = vmatpush1.msra.mxu0 0.0
    %97 = vmatprep.subr.mxu0 0.0
    %98 = vmatpush1.msra.mxu0 0.0
    %99 = vmatprep.subr.mxu0 0.0
    %100 = vmatpush1.msra.mxu0 0.0
    %101 = vmatprep.subr.mxu0 0.0
    %102 = vmatpush1.msra.mxu0 0.0
    %103 = vmatprep.subr.mxu0 0.0
    %104 = vmatpush1.msra.mxu0 0.0
    %105 = vmatprep.subr.mxu0 0.0
    %106 = vmatpush1.msra.mxu0 0.0
    %107 = vmatprep.subr.mxu0 0.0
    %108 = vmatpush1.msra.mxu0 0.0
    %109 = vmatprep.subr.mxu0 0.0
    %110 = vmatpush1.msra.mxu0 0.0
    %111 = vmatprep.subr.mxu0 0.0
    %112 = vmatpush1.msra.mxu0 0.0
    %113 = vmatprep.subr.mxu0 0.0
    %114 = vmatpush1.msra.mxu0 0.0
    %115 = vmatprep.subr.mxu0 0.0
    %116 = vmatpush1.msra.mxu0 0.0
    %117 = vmatprep.subr.mxu0 0.0
    %118 = vmatpush1.msra.mxu0 0.0
    %119 = vmatprep.subr.mxu0 0.0
    %120 = vmatpush1.msra.mxu0 0.0
    %121 = vmatprep.subr.mxu0 0.0
    %122 = vmatpush1.msra.mxu0 0.0
    %123 = vmatprep.subr.mxu0 0.0
    %124 = vmatpush1.msra.mxu0 0.0
    %125 = vmatprep.subr.mxu0 0.0
    %126 = vmatpush1.msra.mxu0 0.0
    %127 = vmatprep.subr.mxu0 0.0
    %128 = vmatpush1.msra.mxu0 0.0
    %129 = vmatprep.subr.mxu0 0.0
    %130 = vmatpush1.msra.mxu0 0.0
    %131 = vmatprep.mubr.f32.mxu0 0.0
    %132 = vmatmul.mubr.f32.gmra.mrb[0].mxu0 %v61
    %v133 = vpop.f32.mrb[0].mxu0
    %v134 = vadd.f32 0.0, %v133
    %v135 = vpop.f32.mrb[0].mxu0
    %136 = vdwg.mxu0
    %137 = vst [vmem:[#allocation5] sm:$0xf] %v134
    // Predicated region
    $region14: #{_grid_sample_line.1} parent=1 // pred_check
      _
    $region15: #{_grid_sample_line.1} parent=1 // pred_check_branch
      %139 = sbr.rel (0) target = $region17
    $region16: #{_grid_sample_line.1} parent=1 // pred_region
      %s141 = ssub.s32 64, 64
      %142 = vsyncadd [#allocation4], %s141
      %s144 = sshll.u32 [#allocation5], 4
      %s145 = int_to_ptr.vmem [resolvable:$true] %s144
      %147 = dma.vmem_to_hbm [thread:$0]  %s145, 64, %s2, [#allocation4]
    $region17: #{_grid_sample_line.1} parent=1 // pred_fallthru
      _
    // Predicated region
    $region18: #{_grid_sample_line.1} parent=1 // pred_check
      _
    $region19: #{_grid_sample_line.1} parent=1 // pred_check_branch
      %149 = sbr.rel (0) target = $region21
    $region20: #{_grid_sample_line.1} parent=1 // pred_region
      %150 = dma.done [#allocation4], 64
    $region21: #{_grid_sample_line.1} parent=1 // pred_fallthru
      _
    %151 = vsyncpa [#allocation3], 1
    %152 = vsyncpa [#allocation4], 1

</llo_original>
